<compile_context>
chip_gen: v7x
topology: tpu7x:2x2x1
jax: 0.10.0
libtpu: 0.0.40
codegen_flags: <defaults>
</compile_context>

<pallas_src>
import jax
import jax.numpy as jnp
from jax.experimental import pallas as pl
from jax.experimental.pallas import tpu as pltpu


def _pick_tile_n(n, c, bytes_per_elem=4, budget_bytes=2 * 1024 * 1024):
    """Largest lane-dense vertex tile (multiple of 128) dividing n whose
    x-block (c * tn * bytes) fits the per-block VMEM budget; else full n."""
    for t in (4096, 2048, 1024, 512, 256, 128):
        if n % t == 0 and c * t * bytes_per_elem <= budget_bytes:
            return t
    return n


# ---------------------------------------------------------------------------
# Kernel 1: channel pooling.  x block (1, C, TN) -> pool block (1, 2, TN).
# ---------------------------------------------------------------------------
def _pool_kernel(x_ref, o_ref):
    x = x_ref[...].astype(jnp.float32)                   # (1, C, TN)
    avg = jnp.mean(x, axis=1, keepdims=True)             # (1, 1, TN)
    mx = jnp.max(x, axis=1, keepdims=True)                # (1, 1, TN)
    # Single full-block, lane-dense store (avoids two masked sublane stores).
    o_ref[...] = jnp.concatenate([avg, mx], axis=1)       # (1, 2, TN)


# ---------------------------------------------------------------------------
# Kernel 2: one-ring conv (Linear 14 -> 1, bias folded into wb) + sigmoid.
#   mat block (1, 14, TN), wb (15, 1) resident, out block (1, 1, TN).
# ---------------------------------------------------------------------------
def _conv_sigmoid_kernel(mat_ref, wb_ref, o_ref):
    m = mat_ref[...]                                       # (1, 14, TN) f32
    wb = wb_ref[...]                                       # (15, 1)
    w = wb[0:14, :]                                        # (14, 1)
    bias = wb[14:15, 0:1]                                  # (1, 1)
    z = jnp.sum(m * w[None, :, :], axis=1, keepdims=True) + bias[None, :, :]
    o_ref[...] = (1.0 / (1.0 + jnp.exp(-z))).astype(o_ref.dtype)


def spatial_attention(x, neigh_orders, w, b):
    """x: (B, C, N) f32; neigh_orders: (N, 7) int32 vertex indices;
    w: (2, 7) conv weights; b: (1,) bias.  Returns (B, 1, N) attention map."""
    B, C, N = x.shape
    tn = _pick_tile_n(N, C)
    grid = (B, N // tn)
    parallel2 = pltpu.CompilerParams(
        dimension_semantics=("parallel", "parallel"))

    # ---- Stage 1: mean/max over channels (reads all of x -> memory bound) ---
    pool = pl.pallas_call(
        _pool_kernel,
        out_shape=jax.ShapeDtypeStruct((B, 2, N), jnp.float32),
        grid=grid,
        in_specs=[pl.BlockSpec((1, C, tn), lambda bi, ni: (bi, 0, ni))],
        out_specs=pl.BlockSpec((1, 2, tn), lambda bi, ni: (bi, 0, ni)),
        compiler_params=parallel2,
        cost_estimate=pl.CostEstimate(
            flops=2 * B * C * N,
            transcendentals=0,
            bytes_accessed=int(x.size) * x.dtype.itemsize + B * 2 * N * 4),
    )(x)

    # ---- One-ring neighbor gather (tiny: 2*N values per batch element) ------
    # TODO(synk): the data-dependent gather along the lane (vertex) axis has no
    # robust in-kernel Pallas expression; done here with XLA advanced indexing.
    neigh_t = neigh_orders.T                               # (7, N)
    mat = pool[:, :, neigh_t].reshape(B, 14, N)            # k = c*7 + j

    # ---- Stage 2: Linear(14 -> 1) over the gathered neighborhood + sigmoid --
    wb = jnp.concatenate(
        [w.reshape(14, 1), jnp.reshape(b, (1, 1))], axis=0).astype(jnp.float32)

    out = pl.pallas_call(
        _conv_sigmoid_kernel,
        out_shape=jax.ShapeDtypeStruct((B, 1, N), jnp.float32),
        grid=grid,
        in_specs=[pl.BlockSpec((1, 14, tn), lambda bi, ni: (bi, 0, ni)),
                  pl.BlockSpec((15, 1), lambda bi, ni: (0, 0))],
        out_specs=pl.BlockSpec((1, 1, tn), lambda bi, ni: (bi, 0, ni)),
        compiler_params=parallel2,
        cost_estimate=pl.CostEstimate(
            flops=2 * B * 14 * N,
            transcendentals=B * N,
            bytes_accessed=B * 14 * N * 4 + B * N * 4 + 15 * 4),
    )(mat, wb)
    return out


def reference(x, neigh_orders, w, b):
    """Pure-JAX reference of the module's forward semantics."""
    avg = jnp.mean(x, axis=1, keepdims=True)
    mx = jnp.max(x, axis=1, keepdims=True)
    pool = jnp.concatenate([avg, mx], axis=1)              # (B, 2, N)
    gathered = pool[:, :, neigh_orders]                    # (B, 2, N, 7)
    z = jnp.einsum("bcvj,cj->bv", gathered, w) + jnp.reshape(b, (1, 1))
    return (1.0 / (1.0 + jnp.exp(-z)))[:, None, :]         # (B, 1, N)


if __name__ == "__main__":
    B, C, N = 2, 16, 1024          # batch, channels, mesh vertices
    key = jax.random.PRNGKey(0)
    kx, kn, kw, kb = jax.random.split(key, 4)

    x = jax.random.normal(kx, (B, C, N), jnp.float32)
    # Synthetic one-ring neighbor table (any valid vertex indices exercise the
    # semantics; a real icosphere table would be supplied by the caller).
    neigh_orders = jax.random.randint(kn, (N, 7), 0, N, jnp.int32)
    bound = 1.0 / jnp.sqrt(14.0)   # nn.Linear(7*2, 1) default init bound
    w = jax.random.uniform(kw, (2, 7), jnp.float32, -bound, bound)
    b = jax.random.uniform(kb, (1,), jnp.float32, -bound, bound)

    out = jax.block_until_ready(spatial_attention(x, neigh_orders, w, b))

    ref = reference(x, neigh_orders, w, b)
    assert out.shape == (B, 1, N), out.shape
    assert jnp.allclose(out, ref, atol=1e-5, rtol=1e-5)

    print("KERNEL_OK")
</pallas_src>

<mosaic_0001>
module attributes {stable_mosaic.version = 11 : i64} {
  func.func @_pool_kernel(%arg0: i32, %arg1: i32, %arg2: memref<1x16x1024xf32, #tpu.memory_space<vmem>>, %arg3: memref<1x2x1024xf32, #tpu.memory_space<vmem>>) attributes {dimension_semantics = [#tpu.dimension_semantics<parallel>, #tpu.dimension_semantics<parallel>], iteration_bounds = array<i64: 2, 1>, scalar_prefetch = 0 : i64, scratch_operands = 0 : i64, tpu.core_type = #tpu.core_type<tc>, window_params = [{transform_indices = @transform_0, window_bounds = array<i64: 1, 16, 1024>}, {transform_indices = @transform_1, window_bounds = array<i64: 1, 2, 1024>}]} {
    %c0 = arith.constant 0 : index
    %c0_0 = arith.constant 0 : index
    %c0_1 = arith.constant 0 : index
    %0 = vector.load %arg2[%c0, %c0_0, %c0_1] : memref<1x16x1024xf32, #tpu.memory_space<vmem>>, vector<1x16x1024xf32>
    %cst = arith.constant dense<0.000000e+00> : vector<1x1024xf32>
    %1 = vector.multi_reduction <add>, %0, %cst [1] : vector<1x16x1024xf32> to vector<1x1024xf32>
    %2 = vector.shape_cast %1 : vector<1x1024xf32> to vector<1x1x1024xf32>
    %cst_2 = arith.constant 1.600000e+01 : f32
    %3 = vector.broadcast %cst_2 : f32 to vector<1x1x1024xf32>
    %4 = arith.divf %2, %3 : vector<1x1x1024xf32>
    %cst_3 = arith.constant dense<0xFF800000> : vector<1x1024xf32>
    %5 = vector.multi_reduction <maximumf>, %0, %cst_3 [1] : vector<1x16x1024xf32> to vector<1x1024xf32>
    %6 = vector.shape_cast %5 : vector<1x1024xf32> to vector<1x1x1024xf32>
    %7 = tpu.concatenate %4, %6 in 1 : vector<1x1x1024xf32>, vector<1x1x1024xf32> -> vector<1x2x1024xf32>
    %c0_4 = arith.constant 0 : index
    %c0_5 = arith.constant 0 : index
    %c0_6 = arith.constant 0 : index
    %8 = vector.load %arg3[%c0_4, %c0_5, %c0_6] : memref<1x2x1024xf32, #tpu.memory_space<vmem>>, vector<1x2x1024xf32>
    tpu.vector_store %arg3[%c0_4, %c0_5, %c0_6], %7 {strides = array<i32>} : memref<1x2x1024xf32, #tpu.memory_space<vmem>>, vector<1x2x1024xf32>,
    return
  }
  func.func @transform_0(%arg0: i32, %arg1: i32) -> (i32, i32, i32) {
    %c0_i32 = arith.constant 0 : i32
    %c0_i32_0 = arith.constant 0 : i32
    return %arg0, %c0_i32, %arg1 : i32, i32, i32
  }
  func.func @transform_1(%arg0: i32, %arg1: i32) -> (i32, i32, i32) {
    %c0_i32 = arith.constant 0 : i32
    %c0_i32_0 = arith.constant 0 : i32
    return %arg0, %c0_i32, %arg1 : i32, i32, i32
  }
}

</mosaic_0001>

<llo_original>
// kernel: tpu_custom_call.1
$region0: #{tpu_custom_call.1}
  #allocation0 [shape = 'u32[]', space=smem, size = 0x4, offset = 0x4, fixed_abs, tag = 'smem constant byte address 0x4 - core index']
  #allocation1 [shape = 'u32[144,128]{1,0:T(1,128)}', space=vmem, size = 0x12000, scoped, tag = 'internal scratch']
  %s0 = inlined_call_operand.hbm [shape: f32[2,16,1024], index: 0, kind: input, shape index: {}]
  %s1 = inlined_call_operand.hbm [shape: f32[2,2,1024], index: 1, kind: output, shape index: {}]
  %s2 = sld [smem:[#allocation0]]
  $region41: #{tpu_custom_call.1} parent=0
    _
  %s4 = ssub.s32 1, %s2
  %s5 = scalar_select 0, %s4, %s2
  $region1: #{tpu_custom_call.1} parent=0
    #allocation2 [shape = 'u8[131072]{0}', space=vmem, size = 0x20000, scoped, tag = 'input window, operand 0']
    #allocation3 [shape = 's32[2]{0}', space=sflag, size = 0x8, scoped, tag = 'scoped memory for tpu_custom_call.1']
    #allocation4 [shape = 's32[2]{0}', space=sflag, size = 0x8, scoped, tag = 'scoped memory for tpu_custom_call.1']
    #allocation5 [shape = 'u8[16384]{0}', space=vmem, size = 0x4000, scoped, tag = 'output window, operand 0']
    %6 = vsyncpa [#allocation3], 0
    %s7 = scalar_lea.sflag [#allocation3], 1
    %8 = vsyncpa %s7, 0
    %9 = vsyncpa [#allocation4], 0
    %s10 = scalar_lea.sflag [#allocation4], 1
    %11 = vsyncpa %s10, 0
    loop: start=0, step=1, limit=4
    $region2: #{tpu_custom_call.1} parent=1 // loop_pre_header
      _
    $region3: #{tpu_custom_call.1} parent=1 // loop_header
      %s13 = sphi 0, %s17
      %p14 = scmp.ge.s32.totalorder %s13, 4
      %s20 = sphi 0, %s32
      %s21 = sphi 0, %s28
      %s22 = sphi 0, %s20
      %s23 = sphi 0, %s21
      %s24 = sphi 0, %s22
      %s25 = sphi 0, %s23
      %s37 = sphi 0, %s39
      %s40 = sphi 0, %s37
      %s41 = sphi 0, %s40
      %s57 = sphi 0, %s41
      %s65 = sphi 0, %s67
      %s68 = sphi 0, %s65
      %s69 = sphi 0, %s68
      %s85 = sphi 0, %s69
    $region4: #{tpu_custom_call.1} parent=1 // loop_header_branch
      %16 = sbr.rel (%p14) target = $region8
    $region5: #{tpu_custom_call.1} parent=1 // loop_body
      %s18 = ssub.s32 %s13, 1
      %s19 = ssub.s32 %s13, 2
      %s26 = sadd.s32 1, %s21
      %p27 = scmp.ge.s32.totalorder %s26, 1
      %s28 = scalar_select %p27, 0, %s26
      %s29 = sadd.s32 1, %s20
      %s30 = scalar_select %p27, %s29, %s20
      %p31 = scmp.ge.s32.totalorder %s30, 2
      %s32 = scalar_select %p31, 0, %s30
      %s33 = ssub.s32 %s20, %s32
      %s34 = ssub.s32 %s21, %s28
      %s35 = sor.u32 %s33, %s34
      %p36 = scmp.eq.s32.totalorder %s35, 0
      %s38 = sadd.s32 %s37, 1
      %s39 = scalar_select %p36, %s37, %s38
      %p42 = pneg %p36
      %p43 = scmp.eq.s32.totalorder %s13, 1
      %p44 = por %p42, %p43
      %p45 = scmp.ne.s32.totalorder %s37, %s40
      %p46 = scmp.eq.s32.totalorder %s13, 0
      %p47 = por %p45, %p46
      %p48 = scmp.ne.s32.totalorder %s37, %s40
      %p49 = scmp.eq.s32.totalorder %s18, 1
      %p50 = por %p48, %p49
      %p51 = scmp.ne.s32.totalorder %s40, %s41
      %p52 = scmp.eq.s32.totalorder %s18, 0
      %p53 = por %p51, %p52
      %p54 = scmp.ne.s32.totalorder %s40, %s41
      %p55 = scmp.eq.s32.totalorder %s19, 1
      %p56 = por %p54, %p55
      %p58 = scmp.ne.s32.totalorder %s41, %s57
      %p59 = scmp.eq.s32.totalorder %s19, 0
      %p60 = por %p58, %p59
      %s61 = ssub.s32 %s20, %s32
      %s62 = ssub.s32 %s21, %s28
      %s63 = sor.u32 %s61, %s62
      %p64 = scmp.eq.s32.totalorder %s63, 0
      %s66 = sadd.s32 %s65, 1
      %s67 = scalar_select %p64, %s65, %s66
      %p70 = pneg %p64
      %p71 = scmp.eq.s32.totalorder %s13, 1
      %p72 = por %p70, %p71
      %p73 = scmp.ne.s32.totalorder %s65, %s68
      %p74 = scmp.eq.s32.totalorder %s13, 0
      %p75 = por %p73, %p74
      %p76 = scmp.ne.s32.totalorder %s65, %s68
      %p77 = scmp.eq.s32.totalorder %s18, 1
      %p78 = por %p76, %p77
      %p79 = scmp.ne.s32.totalorder %s68, %s69
      %p80 = scmp.eq.s32.totalorder %s18, 0
      %p81 = por %p79, %p80
      %p82 = scmp.ne.s32.totalorder %s68, %s69
      %p83 = scmp.eq.s32.totalorder %s19, 1
      %p84 = por %p82, %p83
      %p86 = scmp.ne.s32.totalorder %s69, %s85
      %p87 = scmp.eq.s32.totalorder %s19, 0
      %p88 = por %p86, %p87
      %p89 = scmp.le.s32.totalorder 1, %s13
      %p90 = scmp.lt.s32.totalorder %s13, 3
      %p91 = pnand %p89, %p90
      %p92 = pneg %p91
      // Predicated region
      $region9: #{tpu_custom_call.1} parent=5 // pred_check
        _
      $region10: #{tpu_custom_call.1} parent=5 // pred_check_branch
        %94 = sbr.rel (%p91) target = $region12
      $region11: #{tpu_custom_call.1} parent=5 // pred_region
        %s95 = ssub.s32 %s13, 1
      $region12: #{tpu_custom_call.1} parent=5 // pred_fallthru
        _
      %p96 = scmp.lt.s32.totalorder %s13, 2
      // Predicated region
      $region13: #{tpu_custom_call.1} parent=5 // pred_check
        %p97 = pneg %p96
      $region14: #{tpu_custom_call.1} parent=5 // pred_check_branch
        %99 = sbr.rel (%p97) target = $region16
      $region15: #{tpu_custom_call.1} parent=5 // pred_region
        // Predicated region
        $region17: #{tpu_custom_call.1} parent=15 // pred_check
          %p100 = pneg %p47
        $region18: #{tpu_custom_call.1} parent=15 // pred_check_branch
          %102 = sbr.rel (%p100) target = $region20
        $region19: #{tpu_custom_call.1} parent=15 // pred_region
          %s103 = sand.u32 %s37, 1
          %s104 = scalar_lea.sflag [#allocation3], %s103
          %s105 = sand.u32 %s37, 1
          %s106 = smul.addr %s105, 128
          %s107 = scalar_lea.vmem [#allocation2], %s106
          %s108 = smul.u32 8, %s21
          %s110 = ssub.s32 2048, 2048
          %111 = vsyncadd %s104, %s110
          %s112 = smul.addr %s20, 16
          %s113 = sadd.s32 %s108, %s112
          %s114 = smul.addr %s113, 128
          %s115 = scalar_lea.hbm %s0, %s114
          %s116 = sshll.u32 %s107, 4
          %s117 = int_to_ptr.vmem [resolvable:$true] %s116
          %122 = dma.hbm_to_vmem [thread:$0]  %s115, 2048, %s117, %s104, 1024, 1024, 64
        $region20: #{tpu_custom_call.1} parent=15 // pred_fallthru
          _
      $region16: #{tpu_custom_call.1} parent=5 // pred_fallthru
        _
      %p123 = scmp.le.s32.totalorder 1, %s13
      %p124 = scmp.lt.s32.totalorder %s13, 3
      %p125 = pnand %p123, %p124
      %p126 = pneg %p125
      // Predicated region
      $region21: #{tpu_custom_call.1} parent=5 // pred_check
        _
      $region22: #{tpu_custom_call.1} parent=5 // pred_check_branch
        %128 = sbr.rel (%p125) target = $region24
      $region23: #{tpu_custom_call.1} parent=5 // pred_region
        %s129 = ssub.s32 %s13, 1
        %s130 = sand.u32 %s40, 1
        %s131 = scalar_lea.sflag [#allocation3], %s130
        %s132 = sand.u32 %s40, 1
        %s133 = smul.addr %s132, 128
        %s134 = scalar_lea.vmem [#allocation2], %s133
        // Predicated region
        $region25: #{tpu_custom_call.1} parent=23 // pred_check
          %p135 = pneg %p53
        $region26: #{tpu_custom_call.1} parent=23 // pred_check_branch
          %137 = sbr.rel (%p135) target = $region28
        $region27: #{tpu_custom_call.1} parent=23 // pred_region
          %138 = dma.done %s131, 2048
        $region28: #{tpu_custom_call.1} parent=23 // pred_fallthru
          _
        %s139 = sand.u32 %s40, 1
        %s140 = scalar_lea.sflag [#allocation3], %s139
        %s141 = sand.u32 %s40, 1
        %s142 = smul.addr %s141, 128
        %s143 = scalar_lea.vmem [#allocation2], %s142
        %p144 = pneg %p53
        %p145 = pneg %p50
        %p146 = pneg %p81
        %p147 = pneg %p78
        %s148 = sand.u32 %s68, 1
        %s149 = scalar_lea.sflag [#allocation4], %s148
        %s150 = sand.u32 %s68, 1
        %s151 = smul.addr %s150, 16
        %s152 = scalar_lea.vmem [#allocation5], %s151
        %s153 = smul.u32 8, %s23
        %s154 = smul.u32 8, %s23
        %v155 = vld [vmem:[%s134] sm:$0xff]
        %v156 = vld [vmem:[%s134 + $0x8] sm:$0xff]
        %v157 = vld [vmem:[%s134 + $0x10] sm:$0xff]
        %v158 = vld [vmem:[%s134 + $0x18] sm:$0xff]
        %v159 = vld [vmem:[%s134 + $0x20] sm:$0xff]
        %v160 = vld [vmem:[%s134 + $0x28] sm:$0xff]
        %v161 = vld [vmem:[%s134 + $0x30] sm:$0xff]
        %v162 = vld [vmem:[%s134 + $0x38] sm:$0xff]
        %v163 = vld [vmem:[%s134 + $0x40] sm:$0xff]
        %v164 = vld [vmem:[%s134 + $0x48] sm:$0xff]
        %v165 = vld [vmem:[%s134 + $0x50] sm:$0xff]
        %v166 = vld [vmem:[%s134 + $0x58] sm:$0xff]
        %v167 = vld [vmem:[%s134 + $0x60] sm:$0xff]
        %v168 = vld [vmem:[%s134 + $0x68] sm:$0xff]
        %v169 = vld [vmem:[%s134 + $0x70] sm:$0xff]
        %v170 = vld [vmem:[%s134 + $0x78] sm:$0xff]
        %v171 = vadd.f32 %v155, %v163
        %v172 = vrot.slane %v171, 4
        %v173 = vadd.f32 %v171, %v172
        %v174 = vrot.slane %v173, 2
        %v175 = vadd.f32 %v173, %v174
        %v176 = vrot.slane %v175, 1
        %v177 = vadd.f32 %v175, %v176
        %v178 = vadd.f32 %v156, %v164
        %v179 = vrot.slane %v178, 4
        %v180 = vadd.f32 %v178, %v179
        %v181 = vrot.slane %v180, 2
        %v182 = vadd.f32 %v180, %v181
        %v183 = vrot.slane %v182, 1
        %v184 = vadd.f32 %v182, %v183
        %v185 = vadd.f32 %v157, %v165
        %v186 = vrot.slane %v185, 4
        %v187 = vadd.f32 %v185, %v186
        %v188 = vrot.slane %v187, 2
        %v189 = vadd.f32 %v187, %v188
        %v190 = vrot.slane %v189, 1
        %v191 = vadd.f32 %v189, %v190
        %v192 = vadd.f32 %v158, %v166
        %v193 = vrot.slane %v192, 4
        %v194 = vadd.f32 %v192, %v193
        %v195 = vrot.slane %v194, 2
        %v196 = vadd.f32 %v194, %v195
        %v197 = vrot.slane %v196, 1
        %v198 = vadd.f32 %v196, %v197
        %v199 = vadd.f32 %v159, %v167
        %v200 = vrot.slane %v199, 4
        %v201 = vadd.f32 %v199, %v200
        %v202 = vrot.slane %v201, 2
        %v203 = vadd.f32 %v201, %v202
        %v204 = vrot.slane %v203, 1
        %v205 = vadd.f32 %v203, %v204
        %v206 = vadd.f32 %v160, %v168
        %v207 = vrot.slane %v206, 4
        %v208 = vadd.f32 %v206, %v207
        %v209 = vrot.slane %v208, 2
        %v210 = vadd.f32 %v208, %v209
        %v211 = vrot.slane %v210, 1
        %v212 = vadd.f32 %v210, %v211
        %v213 = vadd.f32 %v161, %v169
        %v214 = vrot.slane %v213, 4
        %v215 = vadd.f32 %v213, %v214
        %v216 = vrot.slane %v215, 2
        %v217 = vadd.f32 %v215, %v216
        %v218 = vrot.slane %v217, 1
        %v219 = vadd.f32 %v217, %v218
        %v220 = vadd.f32 %v162, %v170
        %v221 = vrot.slane %v220, 4
        %v222 = vadd.f32 %v220, %v221
        %v223 = vrot.slane %v222, 2
        %v224 = vadd.f32 %v222, %v223
        %v225 = vrot.slane %v224, 1
        %v226 = vadd.f32 %v224, %v225
        %v227 = vrcp.pop 16.0
        %v228 = vmul.f32 %v177, %v227
        %v229 = vmul.f32 %v184, %v227
        %v230 = vmul.f32 %v191, %v227
        %v231 = vmul.f32 %v198, %v227
        %v232 = vmul.f32 %v205, %v227
        %v233 = vmul.f32 %v212, %v227
        %v234 = vmul.f32 %v219, %v227
        %v235 = vmul.f32 %v226, %v227
        %v236 = vmax.f32 %v155, %v163
        %v237 = vrot.slane %v236, 4
        %v238 = vmax.f32 %v236, %v237
        %v239 = vrot.slane %v238, 2
        %v240 = vmax.f32 %v238, %v239
        %v241 = vrot.slane %v240, 1
        %v242 = vmax.f32 %v240, %v241
        %v243 = vmax.f32 %v156, %v164
        %v244 = vrot.slane %v243, 4
        %v245 = vmax.f32 %v243, %v244
        %v246 = vrot.slane %v245, 2
        %v247 = vmax.f32 %v245, %v246
        %v248 = vrot.slane %v247, 1
        %v249 = vmax.f32 %v247, %v248
        %v250 = vmax.f32 %v157, %v165
        %v251 = vrot.slane %v250, 4
        %v252 = vmax.f32 %v250, %v251
        %v253 = vrot.slane %v252, 2
        %v254 = vmax.f32 %v252, %v253
        %v255 = vrot.slane %v254, 1
        %v256 = vmax.f32 %v254, %v255
        %v257 = vmax.f32 %v158, %v166
        %v258 = vrot.slane %v257, 4
        %v259 = vmax.f32 %v257, %v258
        %v260 = vrot.slane %v259, 2
        %v261 = vmax.f32 %v259, %v260
        %v262 = vrot.slane %v261, 1
        %v263 = vmax.f32 %v261, %v262
        %v264 = vmax.f32 %v159, %v167
        %v265 = vrot.slane %v264, 4
        %v266 = vmax.f32 %v264, %v265
        %v267 = vrot.slane %v266, 2
        %v268 = vmax.f32 %v266, %v267
        %v269 = vrot.slane %v268, 1
        %v270 = vmax.f32 %v268, %v269
        %v271 = vmax.f32 %v160, %v168
        %v272 = vrot.slane %v271, 4
        %v273 = vmax.f32 %v271, %v272
        %v274 = vrot.slane %v273, 2
        %v275 = vmax.f32 %v273, %v274
        %v276 = vrot.slane %v275, 1
        %v277 = vmax.f32 %v275, %v276
        %v278 = vmax.f32 %v161, %v169
        %v279 = vrot.slane %v278, 4
        %v280 = vmax.f32 %v278, %v279
        %v281 = vrot.slane %v280, 2
        %v282 = vmax.f32 %v280, %v281
        %v283 = vrot.slane %v282, 1
        %v284 = vmax.f32 %v282, %v283
        %v285 = vmax.f32 %v162, %v170
        %v286 = vrot.slane %v285, 4
        %v287 = vmax.f32 %v285, %v286
        %v288 = vrot.slane %v287, 2
        %v289 = vmax.f32 %v287, %v288
        %v290 = vrot.slane %v289, 1
        %v291 = vmax.f32 %v289, %v290
        %vm292 = vcmask 1040384
        %v293 = vsel %vm292, %v228, %v242
        %v294 = vsel %vm292, %v229, %v249
        %v295 = vsel %vm292, %v230, %v256
        %v296 = vsel %vm292, %v231, %v263
        %v297 = vsel %vm292, %v232, %v270
        %v298 = vsel %vm292, %v233, %v277
        %v299 = vsel %vm292, %v234, %v284
        %v300 = vsel %vm292, %v235, %v291
        %v309 = vcombine.low %v293, %v294
        %v310 = vcombine.low %v295, %v296
        %v312 = vunpack.c.l.s4 1983009808
        %v313 = vunpack.c.0.s8 %v312
        %v314 = vlaneseq
        %v315 = vshrl.u32 %v314, 7
        %v316 = vsub.s32 %v313, %v315
        %v317 = vrot.slane %v309, %v316
        %v319 = vunpack.c.l.s4 1983009808
        %v320 = vunpack.c.0.s8 %v319
        %v321 = vlaneseq
        %v322 = vshrl.u32 %v321, 7
        %v323 = vsub.s32 %v320, %v322
        %v324 = vrot.slane %v310, %v323
        %v325 = vcombine.low %v317, %v324
        %v326 = vcombine.low %v297, %v298
        %v327 = vcombine.low %v299, %v300
        %v329 = vunpack.c.l.s4 1983009808
        %v330 = vunpack.c.0.s8 %v329
        %v331 = vlaneseq
        %v332 = vshrl.u32 %v331, 7
        %v333 = vsub.s32 %v330, %v332
        %v334 = vrot.slane %v326, %v333
        %v336 = vunpack.c.l.s4 1983009808
        %v337 = vunpack.c.0.s8 %v336
        %v338 = vlaneseq
        %v339 = vshrl.u32 %v338, 7
        %v340 = vsub.s32 %v337, %v339
        %v341 = vrot.slane %v327, %v340
        %v342 = vcombine.low %v334, %v341
        %345 = vst [vmem:[%s152] sm:$0xff] %v325
        %346 = vst [vmem:[%s152 + $0x8] sm:$0xff] %v342
        %s347 = sand.u32 %s68, 1
        %s348 = scalar_lea.sflag [#allocation4], %s347
        %s349 = sand.u32 %s68, 1
        %s350 = smul.addr %s349, 16
        %s351 = scalar_lea.vmem [#allocation5], %s350
        // Predicated region
        $region29: #{tpu_custom_call.1} parent=23 // pred_check
          %p352 = pneg %p78
        $region30: #{tpu_custom_call.1} parent=23 // pred_check_branch
          %354 = sbr.rel (%p352) target = $region32
        $region31: #{tpu_custom_call.1} parent=23 // pred_region
          %s355 = smul.u32 8, %s23
          %s357 = ssub.s32 256, 256
          %358 = vsyncadd %s348, %s357
          %s359 = smul.addr %s22, 8
          %s360 = sadd.s32 %s355, %s359
          %s361 = smul.addr %s360, 32
          %s362 = scalar_lea.hbm %s1, %s361
          %s364 = sshll.u32 %s351, 4
          %s365 = int_to_ptr.vmem [resolvable:$true] %s364
          %367 = dma.vmem_to_hbm [thread:$0]  %s365, 256, %s362, %s348
        $region32: #{tpu_custom_call.1} parent=23 // pred_fallthru
          _
      $region24: #{tpu_custom_call.1} parent=5 // pred_fallthru
        _
      %p368 = scmp.le.s32.totalorder 2, %s13
      // Predicated region
      $region33: #{tpu_custom_call.1} parent=5 // pred_check
        %p369 = pneg %p368
      $region34: #{tpu_custom_call.1} parent=5 // pred_check_branch
        %371 = sbr.rel (%p369) target = $region36
      $region35: #{tpu_custom_call.1} parent=5 // pred_region
        %s372 = ssub.s32 %s13, 2
        // Predicated region
        $region37: #{tpu_custom_call.1} parent=35 // pred_check
          %p373 = pneg %p84
        $region38: #{tpu_custom_call.1} parent=35 // pred_check_branch
          %375 = sbr.rel (%p373) target = $region40
        $region39: #{tpu_custom_call.1} parent=35 // pred_region
          %s376 = sand.u32 %s69, 1
          %s377 = scalar_lea.sflag [#allocation4], %s376
          %s378 = sand.u32 %s69, 1
          %s379 = smul.addr %s378, 16
          %s380 = scalar_lea.vmem [#allocation5], %s379
          %381 = dma.done %s377, 256
        $region40: #{tpu_custom_call.1} parent=35 // pred_fallthru
          _
      $region36: #{tpu_custom_call.1} parent=5 // pred_fallthru
        _
    $region6: #{tpu_custom_call.1} parent=1 // loop_footer
      %s17 = sadd.s32 1, %s13
    $region7: #{tpu_custom_call.1} parent=1 // loop_footer_branch
      %12 = sbr.rel target = $region3
    $region8: #{tpu_custom_call.1} parent=1 // loop_exit
      _
    %382 = vsyncpa [#allocation3], 1
    %s383 = scalar_lea.sflag [#allocation3], 1
    %384 = vsyncpa %s383, 1
    %385 = vsyncpa [#allocation4], 1
    %s386 = scalar_lea.sflag [#allocation4], 1
    %387 = vsyncpa %s386, 1

</llo_original>
